<compile_context>
chip_gen: v6e
topology: v6e:2x2x1
jax: 0.10.0
libtpu: 0.0.40
codegen_flags: <defaults>
</compile_context>

<pallas_src>
import jax
import jax.numpy as jnp
from jax.experimental import pallas as pl
from jax.experimental.pallas import tpu as pltpu

# ---------------- problem sizes (small, consistent with an NCHW conv model) ---
N, C_IN, H, W = 2, 4, 16, 16        # input  (N, C, H, W)
C_HID = 32                          # hidden channels of each sub-model
C_OUT = 4                           # output channels (e.g. segmentation logits)
N_MODELS = 3


# ---------------------------- Pallas kernel -----------------------------------
def ensemble_kernel(x_ref, w1_ref, w2_ref, o_ref):
    # x_ref : (1, C_IN+1, HW)  one batch image; channels on sublanes, pixels on lanes
    #                          (last channel is the constant ones row -> folds b1)
    # w1_ref: (N_MODELS*C_HID+1, C_IN+1)  fused layer-1 weights of all sub-models,
    #                          +b1 column, +const-1 row (folds b2 path)
    # w2_ref: (C_OUT, N_MODELS*C_HID+1)   fused layer-2 weights, pre-scaled by
    #                          1/N_MODELS, +b2_avg column
    # o_ref : (1, C_OUT, HW)   ensemble-averaged output (lane-dense)
    x = x_ref[0]                                                     # (C_IN+1, HW)
    h = jnp.maximum(
        jnp.dot(w1_ref[...], x, preferred_element_type=jnp.float32), 0.0)
    o_ref[0] = jnp.dot(w2_ref[...], h,
                       preferred_element_type=jnp.float32).astype(o_ref.dtype)


# ------------------- one-time parameter fusion (build time) -------------------
def build_ensemble_params(w1s, b1s, w2s, b2s):
    """Fuse the 3 sub-model heads into 2 augmented weight matrices (done once).

      relu(concat_m(W1_m x + b1_m)) == concat_m(relu(W1_m x + b1_m))
      mean_m(W2_m h_m + b2_m)       == [W2_0|W2_1|W2_2]/3 @ concat_m(h_m) + mean_m(b2_m)
    b1 is folded in via an extra input channel that is always 1; b2 via an extra
    hidden unit whose pre-activation is exactly 1 (so relu leaves it at 1).
    """
    n_models, c_hid, c_in = w1s.shape
    c_out = w2s.shape[1]
    c_hid_all = n_models * c_hid

    w1_all = w1s.reshape(c_hid_all, c_in)                                   # (96, 4)
    b1_all = b1s.reshape(c_hid_all, 1)                                      # (96, 1)
    w2_all = jnp.transpose(w2s, (1, 0, 2)).reshape(c_out, c_hid_all) / n_models
    b2_avg = jnp.mean(b2s, axis=0).reshape(c_out, 1)                        # (4, 1)

    const_row = jnp.concatenate(
        [jnp.zeros((1, c_in), w1s.dtype), jnp.ones((1, 1), w1s.dtype)], axis=1)
    w1_aug = jnp.concatenate(
        [jnp.concatenate([w1_all, b1_all], axis=1), const_row], axis=0)     # (97, 5)
    w2_aug = jnp.concatenate([w2_all, b2_avg], axis=1)                      # (4, 97)
    return w1_aug, w2_aug


# ------------------------------- forward ---------------------------------------
@jax.jit
def ensemble_forward(x_nchw, w1_aug, w2_aug):
    """x_nchw: (N, C_IN, H, W) f32 -> (N, C_OUT, H, W) f32 ensemble average."""
    n, c_in, h, w = x_nchw.shape
    hw = h * w
    c_out = w2_aug.shape[0]
    c_hid_aug, c_in_aug = w1_aug.shape

    # Keep the pixel (lane) axis a multiple of 128 -> unmasked vector stores.
    hw_p = -(-hw // 128) * 128
    x3d = x_nchw.reshape(n, c_in, hw)                    # free reshape, no transpose
    if hw_p != hw:
        x3d = jnp.pad(x3d, ((0, 0), (0, 0), (0, hw_p - hw)))
    ones = jnp.ones((n, 1, hw_p), x3d.dtype)
    x_aug = jnp.concatenate([x3d, ones], axis=1)         # (N, C_IN+1, HW_p)

    out3d = pl.pallas_call(
        ensemble_kernel,
        out_shape=jax.ShapeDtypeStruct((n, c_out, hw_p), jnp.float32),
        grid_spec=pltpu.PrefetchScalarGridSpec(
            num_scalar_prefetch=0,
            grid=(n,),                                   # one grid step per image
            in_specs=[
                pl.BlockSpec((1, c_in_aug, hw_p), lambda i: (i, 0, 0)),
                pl.BlockSpec((c_hid_aug, c_in_aug), lambda i: (0, 0)),
                pl.BlockSpec((c_out, c_hid_aug), lambda i: (0, 0)),
            ],
            out_specs=pl.BlockSpec((1, c_out, hw_p), lambda i: (i, 0, 0)),
        ),
        compiler_params=pltpu.CompilerParams(
            dimension_semantics=("parallel",)),          # dual-TC sharding on v7x
    )(x_aug, w1_aug, w2_aug)

    if hw_p != hw:
        out3d = out3d[:, :, :hw]
    return out3d.reshape(n, c_out, h, w)                 # free reshape back to NCHW


# ------------------------------ reference -------------------------------------
def ensemble_reference(x_nchw, w1s, b1s, w2s, b2s):
    n, c, h, w = x_nchw.shape
    n_models = w1s.shape[0]
    c_out = w2s.shape[1]
    x2d = jnp.transpose(x_nchw, (0, 2, 3, 1)).reshape(n * h * w, c)
    outs = []
    for m in range(n_models):
        hdn = jnp.maximum(x2d @ w1s[m].T + b1s[m], 0.0)
        outs.append(hdn @ w2s[m].T + b2s[m])
    out2d = sum(outs) / n_models
    return jnp.transpose(out2d.reshape(n, h, w, c_out), (0, 3, 1, 2))


# -------------------------------- main -----------------------------------------
if __name__ == "__main__":
    key = jax.random.PRNGKey(0)
    kx, k1, k2, k3, k4 = jax.random.split(key, 5)

    # deterministic synthetic input + parameters
    x = jax.random.normal(kx, (N, C_IN, H, W), dtype=jnp.float32)
    w1s = 0.1 * jax.random.normal(k1, (N_MODELS, C_HID, C_IN), dtype=jnp.float32)
    b1s = 0.1 * jax.random.normal(k2, (N_MODELS, C_HID), dtype=jnp.float32)
    w2s = 0.1 * jax.random.normal(k3, (N_MODELS, C_OUT, C_HID), dtype=jnp.float32)
    b2s = 0.1 * jax.random.normal(k4, (N_MODELS, C_OUT), dtype=jnp.float32)

    # one-time model-build fusion (hoisted out of the forward path)
    w1_aug, w2_aug = jax.block_until_ready(build_ensemble_params(w1s, b1s, w2s, b2s))

    out = jax.block_until_ready(ensemble_forward(x, w1_aug, w2_aug))
    ref = jax.block_until_ready(ensemble_reference(x, w1s, b1s, w2s, b2s))

    assert out.shape == (N, C_OUT, H, W), out.shape
    assert jnp.allclose(out, ref, atol=1e-4, rtol=1e-4), "mismatch vs reference"

    print("KERNEL_OK")
</pallas_src>

<mosaic_0001>
module attributes {stable_mosaic.version = 11 : i64} {
  func.func @ensemble_kernel(%arg0: i32, %arg1: memref<1x5x256xf32, #tpu.memory_space<vmem>>, %arg2: memref<97x5xf32, #tpu.memory_space<vmem>>, %arg3: memref<4x97xf32, #tpu.memory_space<vmem>>, %arg4: memref<1x4x256xf32, #tpu.memory_space<vmem>>) attributes {dimension_semantics = [#tpu.dimension_semantics<parallel>], iteration_bounds = array<i64: 2>, scalar_prefetch = 0 : i64, scratch_operands = 0 : i64, tpu.core_type = #tpu.core_type<tc>, window_params = [{transform_indices = @transform_0, window_bounds = array<i64: 1, 5, 256>}, {pipeline_mode = #tpu.pipeline_mode<synchronous>, transform_indices = @transform_1, window_bounds = array<i64: 97, 5>}, {pipeline_mode = #tpu.pipeline_mode<synchronous>, transform_indices = @transform_2, window_bounds = array<i64: 4, 97>}, {transform_indices = @transform_3, window_bounds = array<i64: 1, 4, 256>}]} {
    %c0 = arith.constant 0 : index
    %c0_0 = arith.constant 0 : index
    %c0_1 = arith.constant 0 : index
    %0 = vector.load %arg1[%c0, %c0_0, %c0_1] : memref<1x5x256xf32, #tpu.memory_space<vmem>>, vector<1x5x256xf32>
    %1 = vector.shape_cast %0 : vector<1x5x256xf32> to vector<5x256xf32>
    %c0_2 = arith.constant 0 : index
    %c0_3 = arith.constant 0 : index
    %2 = vector.load %arg2[%c0_2, %c0_3] : memref<97x5xf32, #tpu.memory_space<vmem>>, vector<97x5xf32>
    %cst = arith.constant dense<0.000000e+00> : vector<97x256xf32>
    %3 = tpu.matmul %2, %1, %cst {dimension_numbers = #tpu.dot_dimension_numbers<[1], [0], [0], [1], [0, 0, 1, 1], [], []>} : vector<97x5xf32>, vector<5x256xf32>, vector<97x256xf32> -> vector<97x256xf32>
    %cst_4 = arith.constant 0.000000e+00 : f32
    %4 = vector.broadcast %cst_4 : f32 to vector<97x256xf32>
    %5 = arith.maximumf %3, %4 : vector<97x256xf32>
    %c0_5 = arith.constant 0 : index
    %c0_6 = arith.constant 0 : index
    %6 = vector.load %arg3[%c0_5, %c0_6] : memref<4x97xf32, #tpu.memory_space<vmem>>, vector<4x97xf32>
    %cst_7 = arith.constant dense<0.000000e+00> : vector<4x256xf32>
    %7 = tpu.matmul %6, %5, %cst_7 {dimension_numbers = #tpu.dot_dimension_numbers<[1], [0], [0], [1], [0, 0, 1, 1], [], []>} : vector<4x97xf32>, vector<97x256xf32>, vector<4x256xf32> -> vector<4x256xf32>
    %c0_8 = arith.constant 0 : index
    %c0_9 = arith.constant 0 : index
    %c0_10 = arith.constant 0 : index
    %8 = vector.load %arg4[%c0_8, %c0_9, %c0_10] : memref<1x4x256xf32, #tpu.memory_space<vmem>>, vector<1x4x256xf32>
    %9 = vector.shape_cast %8 : vector<1x4x256xf32> to vector<4x256xf32>
    %10 = vector.shape_cast %7 : vector<4x256xf32> to vector<1x4x256xf32>
    tpu.vector_store %arg4[%c0_8, %c0_9, %c0_10], %10 {strides = array<i32>} : memref<1x4x256xf32, #tpu.memory_space<vmem>>, vector<1x4x256xf32>,
    return
  }
  func.func @transform_0(%arg0: i32) -> (i32, i32, i32) {
    %c0_i32 = arith.constant 0 : i32
    %c0_i32_0 = arith.constant 0 : i32
    %c0_i32_1 = arith.constant 0 : i32
    return %arg0, %c0_i32, %c0_i32_0 : i32, i32, i32
  }
  func.func @transform_1(%arg0: i32) -> (i32, i32) {
    %c0_i32 = arith.constant 0 : i32
    %c0_i32_0 = arith.constant 0 : i32
    %c0_i32_1 = arith.constant 0 : i32
    return %c0_i32, %c0_i32_0 : i32, i32
  }
  func.func @transform_2(%arg0: i32) -> (i32, i32) {
    %c0_i32 = arith.constant 0 : i32
    %c0_i32_0 = arith.constant 0 : i32
    %c0_i32_1 = arith.constant 0 : i32
    return %c0_i32, %c0_i32_0 : i32, i32
  }
  func.func @transform_3(%arg0: i32) -> (i32, i32, i32) {
    %c0_i32 = arith.constant 0 : i32
    %c0_i32_0 = arith.constant 0 : i32
    %c0_i32_1 = arith.constant 0 : i32
    return %arg0, %c0_i32, %c0_i32_0 : i32, i32, i32
  }
}

</mosaic_0001>

<llo_original>
// kernel: ensemble_forward.1
$region0: #{ensemble_forward.1}
  #allocation0 [shape = 'u32[]', space=smem, size = 0x4, offset = 0x4, fixed_abs, tag = 'smem constant byte address 0x4 - core index']
  #allocation1 [shape = 'u32[144,128]{1,0:T(1,128)}', space=vmem, size = 0x12000, scoped, tag = 'internal scratch']
  %s0 = inlined_call_operand.vmem [shape: f32[2,5,256], index: 0, kind: input, shape index: {}]
  %s1 = inlined_call_operand.vmem [shape: f32[97,5], index: 1, kind: input, shape index: {}]
  %s2 = inlined_call_operand.vmem [shape: f32[4,97], index: 2, kind: input, shape index: {}]
  %s3 = inlined_call_operand.vmem [shape: f32[2,4,256], index: 3, kind: output, shape index: {}]
  %s4 = sld [smem:[#allocation0]]
  $region45: #{ensemble_forward.1} parent=0
    _
  %s6 = ssub.s32 1, %s4
  %s7 = scalar_select 0, %s6, %s4
  loop: start=0, step=1, limit=4
  $region2: #{ensemble_forward.1} parent=0 // loop_pre_header
    _
  $region3: #{ensemble_forward.1} parent=0 // loop_header
    %s9 = sphi 0, %s13
    %p10 = scmp.ge.s32.totalorder %s9, 4
    %s19 = sphi 0, %s21
    %s22 = sphi 0, %s19
    %s23 = sphi 0, %s22
    %s39 = sphi 0, %s23
    %s43 = sphi 0, %s43
    %s45 = sphi 0, %s43
    %s46 = sphi 0, %s45
    %s60 = sphi 0, %s46
    %s64 = sphi 0, %s64
    %s66 = sphi 0, %s64
    %s67 = sphi 0, %s66
    %s81 = sphi 0, %s67
    %s87 = sphi 0, %s89
    %s90 = sphi 0, %s87
    %s91 = sphi 0, %s90
    %s107 = sphi 0, %s91
  $region4: #{ensemble_forward.1} parent=0 // loop_header_branch
    %12 = sbr.rel (%p10) target = $region8
  $region5: #{ensemble_forward.1} parent=0 // loop_body
    %s14 = ssub.s32 %s9, 1
    %s15 = ssub.s32 %s9, 2
    %s16 = sadd.s32 %s9, 1
    %s17 = ssub.s32 %s9, %s16
    %p18 = scmp.eq.s32.totalorder %s17, 0
    %s20 = sadd.s32 %s19, 1
    %s21 = scalar_select %p18, %s19, %s20
    %p24 = pneg %p18
    %p25 = scmp.eq.s32.totalorder %s9, 1
    %p26 = por %p24, %p25
    %p27 = scmp.ne.s32.totalorder %s19, %s22
    %p28 = scmp.eq.s32.totalorder %s9, 0
    %p29 = por %p27, %p28
    %p30 = scmp.ne.s32.totalorder %s19, %s22
    %p31 = scmp.eq.s32.totalorder %s14, 1
    %p32 = por %p30, %p31
    %p33 = scmp.ne.s32.totalorder %s22, %s23
    %p34 = scmp.eq.s32.totalorder %s14, 0
    %p35 = por %p33, %p34
    %p36 = scmp.ne.s32.totalorder %s22, %s23
    %p37 = scmp.eq.s32.totalorder %s15, 1
    %p38 = por %p36, %p37
    %p40 = scmp.ne.s32.totalorder %s23, %s39
    %p41 = scmp.eq.s32.totalorder %s15, 0
    %p42 = por %p40, %p41
    %s44 = sadd.s32 %s43, 1
    %p47 = scmp.eq.s32.totalorder %s9, 1
    %p48 = scmp.ne.s32.totalorder %s43, %s45
    %p49 = scmp.eq.s32.totalorder %s9, 0
    %p50 = por %p48, %p49
    %p51 = scmp.ne.s32.totalorder %s43, %s45
    %p52 = scmp.eq.s32.totalorder %s14, 1
    %p53 = por %p51, %p52
    %p54 = scmp.ne.s32.totalorder %s45, %s46
    %p55 = scmp.eq.s32.totalorder %s14, 0
    %p56 = por %p54, %p55
    %p57 = scmp.ne.s32.totalorder %s45, %s46
    %p58 = scmp.eq.s32.totalorder %s15, 1
    %p59 = por %p57, %p58
    %p61 = scmp.ne.s32.totalorder %s46, %s60
    %p62 = scmp.eq.s32.totalorder %s15, 0
    %p63 = por %p61, %p62
    %s65 = sadd.s32 %s64, 1
    %p68 = scmp.eq.s32.totalorder %s9, 1
    %p69 = scmp.ne.s32.totalorder %s64, %s66
    %p70 = scmp.eq.s32.totalorder %s9, 0
    %p71 = por %p69, %p70
    %p72 = scmp.ne.s32.totalorder %s64, %s66
    %p73 = scmp.eq.s32.totalorder %s14, 1
    %p74 = por %p72, %p73
    %p75 = scmp.ne.s32.totalorder %s66, %s67
    %p76 = scmp.eq.s32.totalorder %s14, 0
    %p77 = por %p75, %p76
    %p78 = scmp.ne.s32.totalorder %s66, %s67
    %p79 = scmp.eq.s32.totalorder %s15, 1
    %p80 = por %p78, %p79
    %p82 = scmp.ne.s32.totalorder %s67, %s81
    %p83 = scmp.eq.s32.totalorder %s15, 0
    %p84 = por %p82, %p83
    %s85 = ssub.s32 %s9, %s16
    %p86 = scmp.eq.s32.totalorder %s85, 0
    %s88 = sadd.s32 %s87, 1
    %s89 = scalar_select %p86, %s87, %s88
    %p92 = pneg %p86
    %p93 = scmp.eq.s32.totalorder %s9, 1
    %p94 = por %p92, %p93
    %p95 = scmp.ne.s32.totalorder %s87, %s90
    %p96 = scmp.eq.s32.totalorder %s9, 0
    %p97 = por %p95, %p96
    %p98 = scmp.ne.s32.totalorder %s87, %s90
    %p99 = scmp.eq.s32.totalorder %s14, 1
    %p100 = por %p98, %p99
    %p101 = scmp.ne.s32.totalorder %s90, %s91
    %p102 = scmp.eq.s32.totalorder %s14, 0
    %p103 = por %p101, %p102
    %p104 = scmp.ne.s32.totalorder %s90, %s91
    %p105 = scmp.eq.s32.totalorder %s15, 1
    %p106 = por %p104, %p105
    %p108 = scmp.ne.s32.totalorder %s91, %s107
    %p109 = scmp.eq.s32.totalorder %s15, 0
    %p110 = por %p108, %p109
    %p111 = scmp.le.s32.totalorder 1, %s9
    %p112 = scmp.lt.s32.totalorder %s9, 3
    %p113 = pnand %p111, %p112
    %p114 = pneg %p113
    // Predicated region
    $region9: #{ensemble_forward.1} parent=5 // pred_check
      _
    $region10: #{ensemble_forward.1} parent=5 // pred_check_branch
      %116 = sbr.rel (%p113) target = $region12
    $region11: #{ensemble_forward.1} parent=5 // pred_region
      %s117 = ssub.s32 %s9, 1
      // Predicated region
      $region13: #{ensemble_forward.1} parent=11 // pred_check
        %p118 = pneg %p56
      $region14: #{ensemble_forward.1} parent=11 // pred_check_branch
        %120 = sbr.rel (%p118) target = $region16
      $region15: #{ensemble_forward.1} parent=11 // pred_region
        _
      $region16: #{ensemble_forward.1} parent=11 // pred_fallthru
        _
      // Predicated region
      $region17: #{ensemble_forward.1} parent=11 // pred_check
        %p121 = pneg %p77
      $region18: #{ensemble_forward.1} parent=11 // pred_check_branch
        %123 = sbr.rel (%p121) target = $region20
      $region19: #{ensemble_forward.1} parent=11 // pred_region
        _
      $region20: #{ensemble_forward.1} parent=11 // pred_fallthru
        _
    $region12: #{ensemble_forward.1} parent=5 // pred_fallthru
      _
    %p124 = scmp.lt.s32.totalorder %s9, 2
    // Predicated region
    $region21: #{ensemble_forward.1} parent=5 // pred_check
      %p125 = pneg %p124
    $region22: #{ensemble_forward.1} parent=5 // pred_check_branch
      %127 = sbr.rel (%p125) target = $region24
    $region23: #{ensemble_forward.1} parent=5 // pred_region
      // Predicated region
      $region25: #{ensemble_forward.1} parent=23 // pred_check
        %p128 = pneg %p29
      $region26: #{ensemble_forward.1} parent=23 // pred_check_branch
        %130 = sbr.rel (%p128) target = $region28
      $region27: #{ensemble_forward.1} parent=23 // pred_region
        %p131 = scmp.lt.s32.totalorder %s9, 1
        %s132 = scalar_select %p131, %s9, 1
        %s133 = smul.addr %s132, 2
        %s134 = smul.addr %s133, 8
        %s135 = scalar_lea.vmem %s0, %s134
      $region28: #{ensemble_forward.1} parent=23 // pred_fallthru
        _
    $region24: #{ensemble_forward.1} parent=5 // pred_fallthru
      _
    %p136 = scmp.le.s32.totalorder 1, %s9
    %p137 = scmp.lt.s32.totalorder %s9, 3
    %p138 = pnand %p136, %p137
    %p139 = pneg %p138
    // Predicated region
    $region29: #{ensemble_forward.1} parent=5 // pred_check
      _
    $region30: #{ensemble_forward.1} parent=5 // pred_check_branch
      %141 = sbr.rel (%p138) target = $region32
    $region31: #{ensemble_forward.1} parent=5 // pred_region
      %s142 = ssub.s32 %s9, 1
      %p143 = scmp.lt.s32.totalorder %s14, 1
      %s144 = scalar_select %p143, %s14, 1
      %s145 = smul.addr %s144, 2
      %s146 = smul.addr %s145, 8
      %s147 = scalar_lea.vmem %s0, %s146
      %p148 = pneg %p35
      %p149 = pneg %p32
      %p150 = pneg %p56
      %p151 = pneg %p53
      %p152 = pneg %p77
      %p153 = pneg %p74
      %p154 = pneg %p103
      %p155 = pneg %p100
      %p156 = scmp.lt.s32.totalorder %s14, 1
      %s157 = scalar_select %p156, %s14, 1
      %s158 = smul.addr %s157, 2
      %s159 = smul.addr %s158, 4
      %s160 = scalar_lea.vmem %s3, %s159
      %p161 = scmp.lt.s32.totalorder %s14, 1
      %s162 = scalar_select %p161, %s14, 1
      %s163 = smul.addr %s162, 2
      %s164 = smul.addr %s163, 8
      %s165 = scalar_lea.vmem %s0, %s164
      %p166 = scmp.lt.s32.totalorder %s14, 1
      %s167 = scalar_select %p166, %s14, 1
      %s168 = smul.addr %s167, 2
      %s169 = smul.addr %s168, 4
      %s170 = scalar_lea.vmem %s3, %s169
      %v171 = vld [vmem:[%s165] sm:$0x1f]
      %v172 = vld [vmem:[%s165 + $0x8] sm:$0x1f]
      %v173 = vld [vmem:[%s1] sm:$0xff]
      %v174 = vld [vmem:[%s1 + $0x8] sm:$0xff]
      %v175 = vld [vmem:[%s1 + $0x10] sm:$0xff]
      %v176 = vld [vmem:[%s1 + $0x18] sm:$0xff]
      %v177 = vld [vmem:[%s1 + $0x20] sm:$0xff]
      %v178 = vld [vmem:[%s1 + $0x28] sm:$0xff]
      %v179 = vld [vmem:[%s1 + $0x30] sm:$0xff]
      %v180 = vld [vmem:[%s1 + $0x38] sm:$0xff]
      %v181 = vld [vmem:[%s1 + $0x40] sm:$0xff]
      %v182 = vld [vmem:[%s1 + $0x48] sm:$0xff]
      %v183 = vld [vmem:[%s1 + $0x50] sm:$0xff]
      %v184 = vld [vmem:[%s1 + $0x58] sm:$0xff]
      %v185 = vld [vmem:[%s1 + $0x60] sm:$0x1]
      %vm186 = vcmask 39936
      %v188 = vsel %vm186, %v173, 0
      %v191 = vsel %vm186, %v174, 0
      %v194 = vsel %vm186, %v175, 0
      %v197 = vsel %vm186, %v176, 0
      %v200 = vsel %vm186, %v177, 0
      %v203 = vsel %vm186, %v178, 0
      %v206 = vsel %vm186, %v179, 0
      %v209 = vsel %vm186, %v180, 0
      %v212 = vsel %vm186, %v181, 0
      %v215 = vsel %vm186, %v182, 0
      %v218 = vsel %vm186, %v183, 0
      %v221 = vsel %vm186, %v184, 0
      %v224 = vsel %vm186, %v185, 0
      %vm226 = vcmask 1044480
      %v228 = vsel %vm226, %v171, 0
      %v231 = vsel %vm226, %v172, 0
      %233 = vmatprep.subr.mxu0 0.0
      %234 = vmatpush1.msra.mxu0 0.0
      %235 = vmatprep.subr.mxu0 0.0
      %236 = vmatpush1.msra.mxu0 0.0
      %237 = vmatprep.subr.mxu0 0.0
      %238 = vmatpush1.msra.mxu0 0.0
      %239 = vmatprep.subr.mxu0 0.0
      %240 = vmatpush1.msra.mxu0 0.0
      %241 = vmatprep.subr.mxu0 0.0
      %242 = vmatpush1.msra.mxu0 0.0
      %243 = vmatprep.subr.mxu0 0.0
      %244 = vmatpush1.msra.mxu0 0.0
      %245 = vmatprep.subr.mxu0 0.0
      %246 = vmatpush1.msra.mxu0 0.0
      %247 = vmatprep.subr.mxu0 0.0
      %248 = vmatpush1.msra.mxu0 0.0
      %249 = vmatprep.subr.mxu0 0.0
      %250 = vmatpush1.msra.mxu0 0.0
      %251 = vmatprep.subr.mxu0 0.0
      %252 = vmatpush1.msra.mxu0 0.0
      %253 = vmatprep.subr.mxu0 0.0
      %254 = vmatpush1.msra.mxu0 0.0
      %255 = vmatprep.subr.mxu0 0.0
      %256 = vmatpush1.msra.mxu0 0.0
      %257 = vmatprep.subr.mxu0 0.0
      %258 = vmatpush1.msra.mxu0 0.0
      %259 = vmatprep.subr.mxu0 0.0
      %260 = vmatpush1.msra.mxu0 0.0
      %261 = vmatprep.subr.mxu0 0.0
      %262 = vmatpush1.msra.mxu0 0.0
      %263 = vmatprep.subr.mxu0 %v231
      %264 = vmatpush1.msra.mxu0 %v228
      %265 = vmatprep.subr.mxu0 0.0
      %266 = vmatpush2.msra.mxu0 0.0
      %267 = vmatprep.subr.mxu0 0.0
      %268 = vmatpush2.msra.mxu0 0.0
      %269 = vmatprep.subr.mxu0 0.0
      %270 = vmatpush2.msra.mxu0 0.0
      %271 = vmatprep.subr.mxu0 0.0
      %272 = vmatpush2.msra.mxu0 0.0
      %273 = vmatprep.subr.mxu0 0.0
      %274 = vmatpush2.msra.mxu0 0.0
      %275 = vmatprep.subr.mxu0 0.0
      %276 = vmatpush2.msra.mxu0 0.0
      %277 = vmatprep.subr.mxu0 0.0
      %278 = vmatpush2.msra.mxu0 0.0
      %279 = vmatprep.subr.mxu0 0.0
      %280 = vmatpush2.msra.mxu0 0.0
      %281 = vmatprep.subr.mxu0 0.0
      %282 = vmatpush2.msra.mxu0 0.0
      %283 = vmatprep.subr.mxu0 0.0
      %284 = vmatpush2.msra.mxu0 0.0
      %285 = vmatprep.subr.mxu0 0.0
      %286 = vmatpush2.msra.mxu0 0.0
      %287 = vmatprep.subr.mxu0 0.0
      %288 = vmatpush2.msra.mxu0 0.0
      %289 = vmatprep.subr.mxu0 0.0
      %290 = vmatpush2.msra.mxu0 0.0
      %291 = vmatprep.subr.mxu0 0.0
      %292 = vmatpush2.msra.mxu0 0.0
      %293 = vmatprep.subr.mxu0 0.0
      %294 = vmatpush2.msra.mxu0 0.0
      %295 = vmatprep.subr.mxu0 0.0
      %296 = vmatpush2.msra.mxu0 0.0
      %297 = vmatprep.mubr.f32.mxu0 0.0
      %298 = vmatmul.mubr.f32.gmra.mxu0 %v188
      %v299 = vpop.f32.mrf.mxu0
      %v300 = vadd.f32 0.0, %v299
      %v301 = vpop.f32.mrf.mxu0
      %v302 = vadd.f32 0.0, %v301
      %303 = vmatprep.mubr.f32.mxu0 0.0
      %304 = vmatmul.mubr.f32.gmra.mxu0 %v191
      %v305 = vpop.f32.mrf.mxu0
      %v306 = vadd.f32 0.0, %v305
      %v307 = vpop.f32.mrf.mxu0
      %v308 = vadd.f32 0.0, %v307
      %309 = vmatprep.mubr.f32.mxu0 0.0
      %310 = vmatmul.mubr.f32.gmra.mxu0 %v194
      %v311 = vpop.f32.mrf.mxu0
      %v312 = vadd.f32 0.0, %v311
      %v313 = vpop.f32.mrf.mxu0
      %v314 = vadd.f32 0.0, %v313
      %315 = vmatprep.mubr.f32.mxu0 0.0
      %316 = vmatmul.mubr.f32.gmra.mxu0 %v197
      %v317 = vpop.f32.mrf.mxu0
      %v318 = vadd.f32 0.0, %v317
      %v319 = vpop.f32.mrf.mxu0
      %v320 = vadd.f32 0.0, %v319
      %321 = vmatprep.mubr.f32.mxu0 0.0
      %322 = vmatmul.mubr.f32.gmra.mxu0 %v200
      %v323 = vpop.f32.mrf.mxu0
      %v324 = vadd.f32 0.0, %v323
      %v325 = vpop.f32.mrf.mxu0
      %v326 = vadd.f32 0.0, %v325
      %327 = vmatprep.mubr.f32.mxu0 0.0
      %328 = vmatmul.mubr.f32.gmra.mxu0 %v203
      %v329 = vpop.f32.mrf.mxu0
      %v330 = vadd.f32 0.0, %v329
      %v331 = vpop.f32.mrf.mxu0
      %v332 = vadd.f32 0.0, %v331
      %333 = vmatprep.mubr.f32.mxu0 0.0
      %334 = vmatmul.mubr.f32.gmra.mxu0 %v206
      %v335 = vpop.f32.mrf.mxu0
      %v336 = vadd.f32 0.0, %v335
      %v337 = vpop.f32.mrf.mxu0
      %v338 = vadd.f32 0.0, %v337
      %339 = vmatprep.mubr.f32.mxu0 0.0
      %340 = vmatmul.mubr.f32.gmra.mxu0 %v209
      %v341 = vpop.f32.mrf.mxu0
      %v342 = vadd.f32 0.0, %v341
      %v343 = vpop.f32.mrf.mxu0
      %v344 = vadd.f32 0.0, %v343
      %345 = vmatprep.mubr.f32.mxu0 0.0
      %346 = vmatmul.mubr.f32.gmra.mxu0 %v212
      %v347 = vpop.f32.mrf.mxu0
      %v348 = vadd.f32 0.0, %v347
      %v349 = vpop.f32.mrf.mxu0
      %v350 = vadd.f32 0.0, %v349
      %351 = vmatprep.mubr.f32.mxu0 0.0
      %352 = vmatmul.mubr.f32.gmra.mxu0 %v215
      %v353 = vpop.f32.mrf.mxu0
      %v354 = vadd.f32 0.0, %v353
      %v355 = vpop.f32.mrf.mxu0
      %v356 = vadd.f32 0.0, %v355
      %357 = vmatprep.mubr.f32.mxu0 0.0
      %358 = vmatmul.mubr.f32.gmra.mxu0 %v218
      %v359 = vpop.f32.mrf.mxu0
      %v360 = vadd.f32 0.0, %v359
      %v361 = vpop.f32.mrf.mxu0
      %v362 = vadd.f32 0.0, %v361
      %363 = vmatprep.mubr.f32.mxu0 0.0
      %364 = vmatmul.mubr.f32.gmra.mxu0 %v221
      %v365 = vpop.f32.mrf.mxu0
      %v366 = vadd.f32 0.0, %v365
      %v367 = vpop.f32.mrf.mxu0
      %v368 = vadd.f32 0.0, %v367
      %369 = vmatprep.mubr.f32.mxu0 0.0
      %370 = vmatmul.mubr.f32.gmra.mxu0 %v224
      %v371 = vpop.f32.mrf.mxu0
      %v372 = vadd.f32 0.0, %v371
      %v373 = vpop.f32.mrf.mxu0
      %v374 = vadd.f32 0.0, %v373
      %375 = vdwg.mxu0
      %v376 = vmax.f32 %v300, 0.0
      %v377 = vmax.f32 %v302, 0.0
      %v378 = vmax.f32 %v306, 0.0
      %v379 = vmax.f32 %v308, 0.0
      %v380 = vmax.f32 %v312, 0.0
      %v381 = vmax.f32 %v314, 0.0
      %v382 = vmax.f32 %v318, 0.0
      %v383 = vmax.f32 %v320, 0.0
      %v384 = vmax.f32 %v324, 0.0
      %v385 = vmax.f32 %v326, 0.0
      %v386 = vmax.f32 %v330, 0.0
      %v387 = vmax.f32 %v332, 0.0
      %v388 = vmax.f32 %v336, 0.0
      %v389 = vmax.f32 %v338, 0.0
      %v390 = vmax.f32 %v342, 0.0
      %v391 = vmax.f32 %v344, 0.0
      %v392 = vmax.f32 %v348, 0.0
      %v393 = vmax.f32 %v350, 0.0
      %v394 = vmax.f32 %v354, 0.0
      %v395 = vmax.f32 %v356, 0.0
      %v396 = vmax.f32 %v360, 0.0
      %v397 = vmax.f32 %v362, 0.0
      %v398 = vmax.f32 %v366, 0.0
      %v399 = vmax.f32 %v368, 0.0
      %v400 = vmax.f32 %v372, 0.0
      %v401 = vmax.f32 %v374, 0.0
      %v402 = vld [vmem:[%s2] sm:$0xf]
      %vm403 = vcmask 793600
      %v405 = vsel %vm403, %v402, 0
      %vm407 = vcmask 1040384
      %v409 = vsel %vm407, %v400, 0
      %v412 = vsel %vm407, %v401, 0
      %414 = vmatprep.subr.mxu0 0.0
      %415 = vmatpush1.msra.mxu0 0.0
      %416 = vmatprep.subr.mxu0 0.0
      %417 = vmatpush1.msra.mxu0 0.0
      %418 = vmatprep.subr.mxu0 0.0
      %419 = vmatpush1.msra.mxu0 0.0
      %420 = vmatprep.subr.mxu0 %v412
      %421 = vmatpush1.msra.mxu0 %v409
      %422 = vmatprep.subr.mxu0 %v399
      %423 = vmatpush1.msra.mxu0 %v398
      %424 = vmatprep.subr.mxu0 %v397
      %425 = vmatpush1.msra.mxu0 %v396
      %426 = vmatprep.subr.mxu0 %v395
      %427 = vmatpush1.msra.mxu0 %v394
      %428 = vmatprep.subr.mxu0 %v393
      %429 = vmatpush1.msra.mxu0 %v392
      %430 = vmatprep.subr.mxu0 %v391
      %431 = vmatpush1.msra.mxu0 %v390
      %432 = vmatprep.subr.mxu0 %v389
      %433 = vmatpush1.msra.mxu0 %v388
      %434 = vmatprep.subr.mxu0 %v387
      %435 = vmatpush1.msra.mxu0 %v386
      %436 = vmatprep.subr.mxu0 %v385
      %437 = vmatpush1.msra.mxu0 %v384
      %438 = vmatprep.subr.mxu0 %v383
      %439 = vmatpush1.msra.mxu0 %v382
      %440 = vmatprep.subr.mxu0 %v381
      %441 = vmatpush1.msra.mxu0 %v380
      %442 = vmatprep.subr.mxu0 %v379
      %443 = vmatpush1.msra.mxu0 %v378
      %444 = vmatprep.subr.mxu0 %v377
      %445 = vmatpush1.msra.mxu0 %v376
      %446 = vmatprep.subr.mxu0 0.0
      %447 = vmatpush2.msra.mxu0 0.0
      %448 = vmatprep.subr.mxu0 0.0
      %449 = vmatpush2.msra.mxu0 0.0
      %450 = vmatprep.subr.mxu0 0.0
      %451 = vmatpush2.msra.mxu0 0.0
      %452 = vmatprep.subr.mxu0 0.0
      %453 = vmatpush2.msra.mxu0 0.0
      %454 = vmatprep.subr.mxu0 0.0
      %455 = vmatpush2.msra.mxu0 0.0
      %456 = vmatprep.subr.mxu0 0.0
      %457 = vmatpush2.msra.mxu0 0.0
      %458 = vmatprep.subr.mxu0 0.0
      %459 = vmatpush2.msra.mxu0 0.0
      %460 = vmatprep.subr.mxu0 0.0
      %461 = vmatpush2.msra.mxu0 0.0
      %462 = vmatprep.subr.mxu0 0.0
      %463 = vmatpush2.msra.mxu0 0.0
      %464 = vmatprep.subr.mxu0 0.0
      %465 = vmatpush2.msra.mxu0 0.0
      %466 = vmatprep.subr.mxu0 0.0
      %467 = vmatpush2.msra.mxu0 0.0
      %468 = vmatprep.subr.mxu0 0.0
      %469 = vmatpush2.msra.mxu0 0.0
      %470 = vmatprep.subr.mxu0 0.0
      %471 = vmatpush2.msra.mxu0 0.0
      %472 = vmatprep.subr.mxu0 0.0
      %473 = vmatpush2.msra.mxu0 0.0
      %474 = vmatprep.subr.mxu0 0.0
      %475 = vmatpush2.msra.mxu0 0.0
      %476 = vmatprep.subr.mxu0 0.0
      %477 = vmatpush2.msra.mxu0 0.0
      %478 = vmatprep.mubr.f32.mxu0 0.0
      %479 = vmatmul.mubr.f32.gmra.mxu0 %v405
      %v480 = vpop.f32.mrf.mxu0
      %v481 = vadd.f32 0.0, %v480
      %v482 = vpop.f32.mrf.mxu0
      %v483 = vadd.f32 0.0, %v482
      %484 = vdwg.mxu0
      %v487 = vcombine.low %v481, %v483
      %489 = vst [vmem:[%s170] sm:$0xff] %v487
      %p490 = scmp.lt.s32.totalorder %s14, 1
      %s491 = scalar_select %p490, %s14, 1
      %s492 = smul.addr %s491, 2
      %s493 = smul.addr %s492, 4
      %s494 = scalar_lea.vmem %s3, %s493
      // Predicated region
      $region33: #{ensemble_forward.1} parent=31 // pred_check
        %p495 = pneg %p100
      $region34: #{ensemble_forward.1} parent=31 // pred_check_branch
        %497 = sbr.rel (%p495) target = $region36
      $region35: #{ensemble_forward.1} parent=31 // pred_region
        _
      $region36: #{ensemble_forward.1} parent=31 // pred_fallthru
        _
    $region32: #{ensemble_forward.1} parent=5 // pred_fallthru
      _
    %p498 = scmp.le.s32.totalorder 2, %s9
    // Predicated region
    $region37: #{ensemble_forward.1} parent=5 // pred_check
      %p499 = pneg %p498
    $region38: #{ensemble_forward.1} parent=5 // pred_check_branch
      %501 = sbr.rel (%p499) target = $region40
    $region39: #{ensemble_forward.1} parent=5 // pred_region
      %s502 = ssub.s32 %s9, 2
      // Predicated region
      $region41: #{ensemble_forward.1} parent=39 // pred_check
        %p503 = pneg %p106
      $region42: #{ensemble_forward.1} parent=39 // pred_check_branch
        %505 = sbr.rel (%p503) target = $region44
      $region43: #{ensemble_forward.1} parent=39 // pred_region
        %p506 = scmp.lt.s32.totalorder %s15, 1
        %s507 = scalar_select %p506, %s15, 1
        %s508 = smul.addr %s507, 2
        %s509 = smul.addr %s508, 4
        %s510 = scalar_lea.vmem %s3, %s509
      $region44: #{ensemble_forward.1} parent=39 // pred_fallthru
        _
    $region40: #{ensemble_forward.1} parent=5 // pred_fallthru
      _
  $region6: #{ensemble_forward.1} parent=0 // loop_footer
    %s13 = sadd.s32 1, %s9
  $region7: #{ensemble_forward.1} parent=0 // loop_footer_branch
    %8 = sbr.rel target = $region3
  $region8: #{ensemble_forward.1} parent=0 // loop_exit
    _

</llo_original>
